<compile_context>
chip_gen: v7x
topology: tpu7x:2x2x1
jax: 0.10.0
libtpu: 0.0.40
codegen_flags: <defaults>
</compile_context>

<pallas_src>
import functools

import jax
import jax.numpy as jnp
from jax.experimental import pallas as pl
from jax.experimental.pallas import tpu as pltpu


def _round_up(x, m):
    return (x + m - 1) // m * m


def mlp_logsoftmax_kernel(x_ref, w1b1_ref, w2b2_ref, o_ref, *,
                          input_dim, hidden_dim, in_p, hid_p):
    # x_ref: (B, input_dim) for the current instance (leading grid dim squeezed)
    x = x_ref[...]                                         # f32 (B, input_dim)

    # ---- Layer 1: Linear + bias + ReLU (MXU matmul, f32 accumulation) ----
    w1 = w1b1_ref[0:input_dim, :]                          # aligned view (input_dim % 8 == 0)
    b1 = w1b1_ref[in_p:in_p + 1, :]                        # (1, hidden), aligned bias row
    h = jnp.dot(x, w1, preferred_element_type=jnp.float32) + b1
    h = jnp.maximum(h, jnp.float32(0.0))                   # ReLU in f32 (VPU)

    # ---- Layer 2: Linear + bias (lane-dense padded output columns) ----
    w2 = w2b2_ref[0:hidden_dim, :]                         # (hidden, out_pad)
    b2 = w2b2_ref[hid_p:hid_p + 1, :]                      # (1, out_pad), aligned bias row
    z = jnp.dot(h, w2, preferred_element_type=jnp.float32) + b2

    # ---- log_softmax over dim=0 (batch axis of this instance), stable ----
    # Padded output columns are all-zero -> finite values; sliced off in wrapper.
    m = jnp.max(z, axis=0, keepdims=True)                  # (1, out_pad)
    lse = m + jnp.log(jnp.sum(jnp.exp(z - m), axis=0, keepdims=True))
    o_ref[...] = (z - lse).astype(o_ref.dtype)             # full 128-lane store


def pack_params(w1, b1, w2, b2, param_dtype=jnp.float32):
    """Pack parameters ONCE into two sublane/lane-aligned slabs.

    w1b1: (round_up(in,8)+1, hidden)   rows [0:in)=W1, row in_p=b1, rest zero
    w2b2: (round_up(hid,8)+1, out_pad) rows [0:hid)=W2, row hid_p=b2, cols padded to 128
    """
    input_dim, hidden_dim = w1.shape
    _, output_dim = w2.shape
    in_p = _round_up(input_dim, 8)
    hid_p = _round_up(hidden_dim, 8)
    out_p = _round_up(output_dim, 128)

    w1b1 = jnp.zeros((in_p + 1, hidden_dim), param_dtype)
    w1b1 = w1b1.at[:input_dim, :].set(w1.astype(param_dtype))
    w1b1 = w1b1.at[in_p, :].set(b1.astype(param_dtype))

    w2b2 = jnp.zeros((hid_p + 1, out_p), param_dtype)
    w2b2 = w2b2.at[:hidden_dim, :output_dim].set(w2.astype(param_dtype))
    w2b2 = w2b2.at[hid_p, :output_dim].set(b2.astype(param_dtype))
    return w1b1, w2b2


def neural_net_forward(x, w1b1, w2b2, *, output_dim):
    """Forward pass.

    x: (B, input_dim) for a single forward, or (N, B, input_dim) for N
       independent instances amortized over one pallas_call (log_softmax is
       over each instance's own batch axis).
    Returns (B, output_dim) or (N, B, output_dim), f32.
    """
    squeeze = (x.ndim == 2)
    if squeeze:
        x = x[None]
    N, B, input_dim = x.shape
    hidden_dim = w1b1.shape[1]
    in_p = w1b1.shape[0] - 1
    hid_p = w2b2.shape[0] - 1
    out_p = w2b2.shape[1]
    assert in_p >= input_dim and hid_p >= hidden_dim and out_p >= output_dim

    kernel = functools.partial(
        mlp_logsoftmax_kernel,
        input_dim=input_dim, hidden_dim=hidden_dim, in_p=in_p, hid_p=hid_p)

    flops = 2 * N * B * (input_dim * hidden_dim + hidden_dim * out_p)
    transcendentals = N * (B * out_p + out_p)            # exp + log in log-softmax
    bytes_accessed = 4 * (x.size + w1b1.size + w2b2.size + N * B * out_p)

    out = pl.pallas_call(
        kernel,
        out_shape=jax.ShapeDtypeStruct((N, B, out_p), jnp.float32),
        grid=(N,),
        in_specs=[
            # One instance of x per grid step.
            pl.BlockSpec((None, B, input_dim), lambda i: (i, 0, 0)),
            # Weight slabs: constant block index -> DMA'd once, VMEM-resident.
            pl.BlockSpec(w1b1.shape, lambda i: (0, 0)),
            pl.BlockSpec(w2b2.shape, lambda i: (0, 0)),
        ],
        out_specs=pl.BlockSpec((None, B, out_p), lambda i: (i, 0, 0)),
        compiler_params=pltpu.CompilerParams(
            dimension_semantics=("parallel",)),          # shard instances across TCs (v7x)
        cost_estimate=pl.CostEstimate(
            flops=flops,
            transcendentals=transcendentals,
            bytes_accessed=bytes_accessed),
    )(x, w1b1, w2b2)

    out = out[..., :output_dim]                           # drop lane padding
    if squeeze:
        out = out[0]
    return out


def init_params(key, input_dim, hidden_dim, output_dim):
    # Deterministic init mimicking nn.Linear's uniform(-1/sqrt(fan_in), +).
    k1, k2, k3, k4 = jax.random.split(key, 4)
    s1 = 1.0 / jnp.sqrt(input_dim)
    s2 = 1.0 / jnp.sqrt(hidden_dim)
    w1 = jax.random.uniform(k1, (input_dim, hidden_dim), jnp.float32, -s1, s1)
    b1 = jax.random.uniform(k2, (hidden_dim,), jnp.float32, -s1, s1)
    w2 = jax.random.uniform(k3, (hidden_dim, output_dim), jnp.float32, -s2, s2)
    b2 = jax.random.uniform(k4, (output_dim,), jnp.float32, -s2, s2)
    return w1, b1, w2, b2


if __name__ == "__main__":
    batch, input_dim, hidden_dim, output_dim = 8, 32, 32, 16

    key = jax.random.PRNGKey(0)
    kx1, kx2, kp = jax.random.split(key, 3)
    x = jax.random.normal(kx1, (batch, input_dim), jnp.float32)
    w1, b1, w2, b2 = init_params(kp, input_dim, hidden_dim, output_dim)

    # Pack biases / padding into aligned weight slabs once (parameter prep).
    w1b1, w2b2 = pack_params(w1, b1, w2, b2)

    fwd = jax.jit(functools.partial(neural_net_forward, output_dim=output_dim))

    # Pure-JAX reference with the same semantics as the PyTorch module.
    def ref_forward(xi):
        h = jnp.maximum(xi @ w1 + b1, 0.0)
        z = h @ w2 + b2
        return jax.nn.log_softmax(z, axis=0)              # dim=0 == batch axis

    # --- Single forward (matches NeuralNet.forward exactly) ---
    out = fwd(x, w1b1, w2b2)
    jax.block_until_ready(out)
    assert out.shape == (batch, output_dim)
    assert jnp.allclose(out, ref_forward(x), atol=1e-5, rtol=1e-5)

    # --- Amortized path: N independent instances in ONE pallas_call ---
    xN = jax.random.normal(kx2, (4, batch, input_dim), jnp.float32)
    outN = fwd(xN, w1b1, w2b2)
    jax.block_until_ready(outN)
    assert outN.shape == (4, batch, output_dim)
    assert jnp.allclose(outN, jax.vmap(ref_forward)(xN), atol=1e-5, rtol=1e-5)

    print("KERNEL_OK")
</pallas_src>

<mosaic_0001>
module attributes {stable_mosaic.version = 11 : i64} {
  func.func @mlp_logsoftmax_kernel(%arg0: i32, %arg1: memref<1x8x32xf32, #tpu.memory_space<vmem>>, %arg2: memref<33x32xf32, #tpu.memory_space<vmem>>, %arg3: memref<33x128xf32, #tpu.memory_space<vmem>>, %arg4: memref<1x8x128xf32, #tpu.memory_space<vmem>>) attributes {dimension_semantics = [#tpu.dimension_semantics<parallel>], iteration_bounds = array<i64: 1>, scalar_prefetch = 0 : i64, scratch_operands = 0 : i64, tpu.core_type = #tpu.core_type<tc>, window_params = [{transform_indices = @transform_0, window_bounds = array<i64: 1, 8, 32>}, {pipeline_mode = #tpu.pipeline_mode<synchronous>, transform_indices = @transform_1, window_bounds = array<i64: 33, 32>}, {pipeline_mode = #tpu.pipeline_mode<synchronous>, transform_indices = @transform_2, window_bounds = array<i64: 33, 128>}, {transform_indices = @transform_3, window_bounds = array<i64: 1, 8, 128>}]} {
    %c0 = arith.constant 0 : index
    %c0_0 = arith.constant 0 : index
    %c0_1 = arith.constant 0 : index
    %0 = vector.load %arg1[%c0, %c0_0, %c0_1] : memref<1x8x32xf32, #tpu.memory_space<vmem>>, vector<1x8x32xf32>
    %1 = vector.shape_cast %0 : vector<1x8x32xf32> to vector<8x32xf32>
    %c0_2 = arith.constant 0 : index
    %c0_3 = arith.constant 0 : index
    %2 = vector.load %arg2[%c0_2, %c0_3] : memref<33x32xf32, #tpu.memory_space<vmem>>, vector<32x32xf32>
    %c32 = arith.constant 32 : index
    %c0_4 = arith.constant 0 : index
    %3 = vector.load %arg2[%c32, %c0_4] : memref<33x32xf32, #tpu.memory_space<vmem>>, vector<1x32xf32>
    %cst = arith.constant dense<0.000000e+00> : vector<8x32xf32>
    %4 = tpu.matmul %1, %2, %cst {dimension_numbers = #tpu.dot_dimension_numbers<[1], [0], [0], [1], [0, 0, 1, 1], [], []>} : vector<8x32xf32>, vector<32x32xf32>, vector<8x32xf32> -> vector<8x32xf32>
    %5 = vector.broadcast %3 : vector<1x32xf32> to vector<8x32xf32>
    %6 = arith.addf %4, %5 : vector<8x32xf32>
    %cst_5 = arith.constant 0.000000e+00 : f32
    %7 = vector.broadcast %cst_5 : f32 to vector<8x32xf32>
    %8 = arith.maximumf %6, %7 : vector<8x32xf32>
    %c0_6 = arith.constant 0 : index
    %c0_7 = arith.constant 0 : index
    %9 = vector.load %arg3[%c0_6, %c0_7] : memref<33x128xf32, #tpu.memory_space<vmem>>, vector<32x128xf32>
    %c32_8 = arith.constant 32 : index
    %c0_9 = arith.constant 0 : index
    %10 = vector.load %arg3[%c32_8, %c0_9] : memref<33x128xf32, #tpu.memory_space<vmem>>, vector<1x128xf32>
    %cst_10 = arith.constant dense<0.000000e+00> : vector<8x128xf32>
    %11 = tpu.matmul %8, %9, %cst_10 {dimension_numbers = #tpu.dot_dimension_numbers<[1], [0], [0], [1], [0, 0, 1, 1], [], []>} : vector<8x32xf32>, vector<32x128xf32>, vector<8x128xf32> -> vector<8x128xf32>
    %12 = vector.broadcast %10 : vector<1x128xf32> to vector<8x128xf32>
    %13 = arith.addf %11, %12 : vector<8x128xf32>
    %cst_11 = arith.constant dense<0xFF800000> : vector<128xf32>
    %14 = vector.multi_reduction <maximumf>, %13, %cst_11 [0] : vector<8x128xf32> to vector<128xf32>
    %15 = vector.shape_cast %14 : vector<128xf32> to vector<1x128xf32>
    %16 = vector.broadcast %15 : vector<1x128xf32> to vector<8x128xf32>
    %17 = arith.subf %13, %16 : vector<8x128xf32>
    %18 = math.exp %17 : vector<8x128xf32>
    %cst_12 = arith.constant dense<0.000000e+00> : vector<128xf32>
    %19 = vector.multi_reduction <add>, %18, %cst_12 [0] : vector<8x128xf32> to vector<128xf32>
    %20 = vector.shape_cast %19 : vector<128xf32> to vector<1x128xf32>
    %21 = math.log %20 : vector<1x128xf32>
    %22 = arith.addf %15, %21 : vector<1x128xf32>
    %23 = vector.broadcast %22 : vector<1x128xf32> to vector<8x128xf32>
    %24 = arith.subf %13, %23 : vector<8x128xf32>
    %c0_13 = arith.constant 0 : index
    %c0_14 = arith.constant 0 : index
    %c0_15 = arith.constant 0 : index
    %25 = vector.load %arg4[%c0_13, %c0_14, %c0_15] : memref<1x8x128xf32, #tpu.memory_space<vmem>>, vector<1x8x128xf32>
    %26 = vector.shape_cast %25 : vector<1x8x128xf32> to vector<8x128xf32>
    %27 = vector.shape_cast %24 : vector<8x128xf32> to vector<1x8x128xf32>
    tpu.vector_store %arg4[%c0_13, %c0_14, %c0_15], %27 {strides = array<i32>} : memref<1x8x128xf32, #tpu.memory_space<vmem>>, vector<1x8x128xf32>,
    return
  }
  func.func @transform_0(%arg0: i32) -> (i32, i32, i32) {
    %c0_i32 = arith.constant 0 : i32
    %c0_i32_0 = arith.constant 0 : i32
    %c0_i32_1 = arith.constant 0 : i32
    return %arg0, %c0_i32, %c0_i32_0 : i32, i32, i32
  }
  func.func @transform_1(%arg0: i32) -> (i32, i32) {
    %c0_i32 = arith.constant 0 : i32
    %c0_i32_0 = arith.constant 0 : i32
    %c0_i32_1 = arith.constant 0 : i32
    return %c0_i32, %c0_i32_0 : i32, i32
  }
  func.func @transform_2(%arg0: i32) -> (i32, i32) {
    %c0_i32 = arith.constant 0 : i32
    %c0_i32_0 = arith.constant 0 : i32
    %c0_i32_1 = arith.constant 0 : i32
    return %c0_i32, %c0_i32_0 : i32, i32
  }
  func.func @transform_3(%arg0: i32) -> (i32, i32, i32) {
    %c0_i32 = arith.constant 0 : i32
    %c0_i32_0 = arith.constant 0 : i32
    %c0_i32_1 = arith.constant 0 : i32
    return %arg0, %c0_i32, %c0_i32_0 : i32, i32, i32
  }
}

</mosaic_0001>

<llo_original>
// kernel: neural_net_forward.1
$region0: #{neural_net_forward.1}
  #allocation0 [shape = 'u32[]', space=smem, size = 0x4, offset = 0x4, fixed_abs, tag = 'smem constant byte address 0x4 - core index']
  #allocation1 [shape = 'u32[144,128]{1,0:T(1,128)}', space=vmem, size = 0x12000, scoped, tag = 'internal scratch']
  %s0 = inlined_call_operand.vmem [shape: f32[1,8,32], index: 0, kind: input, shape index: {}]
  %s1 = inlined_call_operand.vmem [shape: f32[33,32], index: 1, kind: input, shape index: {}]
  %s2 = inlined_call_operand.vmem [shape: f32[33,128], index: 2, kind: input, shape index: {}]
  %s3 = inlined_call_operand.vmem [shape: f32[1,8,128], index: 3, kind: output, shape index: {}]
  %s4 = sld [smem:[#allocation0]]
  $region22: #{neural_net_forward.1} parent=0
    _
  %s6 = ssub.s32 1, %s4
  %s7 = scalar_select 0, %s6, %s4
  // Predicated region
  $region2: #{neural_net_forward.1} parent=0 // pred_check
    _
  $region3: #{neural_net_forward.1} parent=0 // pred_check_branch
    %9 = sbr.rel (0) target = $region5
  $region4: #{neural_net_forward.1} parent=0 // pred_region
    _
  $region5: #{neural_net_forward.1} parent=0 // pred_fallthru
    _
  // Predicated region
  $region6: #{neural_net_forward.1} parent=0 // pred_check
    _
  $region7: #{neural_net_forward.1} parent=0 // pred_check_branch
    %11 = sbr.rel (0) target = $region9
  $region8: #{neural_net_forward.1} parent=0 // pred_region
    _
  $region9: #{neural_net_forward.1} parent=0 // pred_fallthru
    _
  // Predicated region
  $region10: #{neural_net_forward.1} parent=0 // pred_check
    _
  $region11: #{neural_net_forward.1} parent=0 // pred_check_branch
    %13 = sbr.rel (0) target = $region13
  $region12: #{neural_net_forward.1} parent=0 // pred_region
    _
  $region13: #{neural_net_forward.1} parent=0 // pred_fallthru
    _
  %v14 = vld [vmem:[%s0] sm:$0xff]
  %v15 = vld [vmem:[%s1] sm:$0xff]
  %v16 = vld [vmem:[%s1 + $0x8] sm:$0xff]
  %v17 = vld [vmem:[%s1 + $0x10] sm:$0xff]
  %v18 = vld [vmem:[%s1 + $0x18] sm:$0xff]
  %v19 = vld [vmem:[%s1 + $0x20] sm:$0x1]
  %v20 = vlaneseq
  %v21 = vshrl.u32 %v20, 7
  %v22 = vsub.s32 0, %v21
  %v23 = vrot.slane %v19, %v22
  %vm24 = vcmask 261120
  %v26 = vsel %vm24, %v14, 0
  %28 = vmatprep.subr.mxu0 0.0
  %29 = vmatpush1.msra.mxu0 %v15
  %30 = vmatprep.subr.mxu0 0.0
  %31 = vmatpush1.msra.mxu0 %v16
  %32 = vmatprep.subr.mxu0 0.0
  %33 = vmatpush1.msra.mxu0 %v17
  %34 = vmatprep.subr.mxu0 0.0
  %35 = vmatpush1.msra.mxu0 %v18
  %36 = vmatprep.subr.mxu0 0.0
  %37 = vmatpush1.msra.mxu0 0.0
  %38 = vmatprep.subr.mxu0 0.0
  %39 = vmatpush1.msra.mxu0 0.0
  %40 = vmatprep.subr.mxu0 0.0
  %41 = vmatpush1.msra.mxu0 0.0
  %42 = vmatprep.subr.mxu0 0.0
  %43 = vmatpush1.msra.mxu0 0.0
  %44 = vmatprep.subr.mxu0 0.0
  %45 = vmatpush1.msra.mxu0 0.0
  %46 = vmatprep.subr.mxu0 0.0
  %47 = vmatpush1.msra.mxu0 0.0
  %48 = vmatprep.subr.mxu0 0.0
  %49 = vmatpush1.msra.mxu0 0.0
  %50 = vmatprep.subr.mxu0 0.0
  %51 = vmatpush1.msra.mxu0 0.0
  %52 = vmatprep.subr.mxu0 0.0
  %53 = vmatpush1.msra.mxu0 0.0
  %54 = vmatprep.subr.mxu0 0.0
  %55 = vmatpush1.msra.mxu0 0.0
  %56 = vmatprep.subr.mxu0 0.0
  %57 = vmatpush1.msra.mxu0 0.0
  %58 = vmatprep.subr.mxu0 0.0
  %59 = vmatpush1.msra.mxu0 0.0
  %60 = vmatprep.subr.mxu0 0.0
  %61 = vmatpush1.msra.mxu0 0.0
  %62 = vmatprep.subr.mxu0 0.0
  %63 = vmatpush1.msra.mxu0 0.0
  %64 = vmatprep.subr.mxu0 0.0
  %65 = vmatpush1.msra.mxu0 0.0
  %66 = vmatprep.subr.mxu0 0.0
  %67 = vmatpush1.msra.mxu0 0.0
  %68 = vmatprep.subr.mxu0 0.0
  %69 = vmatpush1.msra.mxu0 0.0
  %70 = vmatprep.subr.mxu0 0.0
  %71 = vmatpush1.msra.mxu0 0.0
  %72 = vmatprep.subr.mxu0 0.0
  %73 = vmatpush1.msra.mxu0 0.0
  %74 = vmatprep.subr.mxu0 0.0
  %75 = vmatpush1.msra.mxu0 0.0
  %76 = vmatprep.subr.mxu0 0.0
  %77 = vmatpush1.msra.mxu0 0.0
  %78 = vmatprep.subr.mxu0 0.0
  %79 = vmatpush1.msra.mxu0 0.0
  %80 = vmatprep.subr.mxu0 0.0
  %81 = vmatpush1.msra.mxu0 0.0
  %82 = vmatprep.subr.mxu0 0.0
  %83 = vmatpush1.msra.mxu0 0.0
  %84 = vmatprep.subr.mxu0 0.0
  %85 = vmatpush1.msra.mxu0 0.0
  %86 = vmatprep.subr.mxu0 0.0
  %87 = vmatpush1.msra.mxu0 0.0
  %88 = vmatprep.subr.mxu0 0.0
  %89 = vmatpush1.msra.mxu0 0.0
  %90 = vmatprep.subr.mxu0 0.0
  %91 = vmatpush1.msra.mxu0 0.0
  %92 = vmatprep.mubr.f32.mxu0 0.0
  %93 = vmatmul.mubr.f32.gmra.mrb[0].mxu0 %v26
  %v94 = vpop.f32.mrb[0].mxu0
  %v95 = vadd.f32 %v23, %v94
  %v96 = vpop.f32.mrb[0].mxu0
  %97 = vdwg.mxu0
  %v98 = vmax.f32 %v95, 0.0
  %v99 = vld [vmem:[%s2] sm:$0xff]
  %v100 = vld [vmem:[%s2 + $0x8] sm:$0xff]
  %v101 = vld [vmem:[%s2 + $0x10] sm:$0xff]
  %v102 = vld [vmem:[%s2 + $0x18] sm:$0xff]
  %v103 = vld [vmem:[%s2 + $0x20] sm:$0x1]
  %v104 = vlaneseq
  %v105 = vshrl.u32 %v104, 7
  %v106 = vsub.s32 0, %v105
  %v107 = vrot.slane %v103, %v106
  %v109 = vsel %vm24, %v98, 0
  %111 = vmatprep.subr.mxu0 0.0
  %112 = vmatpush1.msra.mxu0 %v99
  %113 = vmatprep.subr.mxu0 0.0
  %114 = vmatpush1.msra.mxu0 %v100
  %115 = vmatprep.subr.mxu0 0.0
  %116 = vmatpush1.msra.mxu0 %v101
  %117 = vmatprep.subr.mxu0 0.0
  %118 = vmatpush1.msra.mxu0 %v102
  %119 = vmatprep.subr.mxu0 0.0
  %120 = vmatpush1.msra.mxu0 0.0
  %121 = vmatprep.subr.mxu0 0.0
  %122 = vmatpush1.msra.mxu0 0.0
  %123 = vmatprep.subr.mxu0 0.0
  %124 = vmatpush1.msra.mxu0 0.0
  %125 = vmatprep.subr.mxu0 0.0
  %126 = vmatpush1.msra.mxu0 0.0
  %127 = vmatprep.subr.mxu0 0.0
  %128 = vmatpush1.msra.mxu0 0.0
  %129 = vmatprep.subr.mxu0 0.0
  %130 = vmatpush1.msra.mxu0 0.0
  %131 = vmatprep.subr.mxu0 0.0
  %132 = vmatpush1.msra.mxu0 0.0
  %133 = vmatprep.subr.mxu0 0.0
  %134 = vmatpush1.msra.mxu0 0.0
  %135 = vmatprep.subr.mxu0 0.0
  %136 = vmatpush1.msra.mxu0 0.0
  %137 = vmatprep.subr.mxu0 0.0
  %138 = vmatpush1.msra.mxu0 0.0
  %139 = vmatprep.subr.mxu0 0.0
  %140 = vmatpush1.msra.mxu0 0.0
  %141 = vmatprep.subr.mxu0 0.0
  %142 = vmatpush1.msra.mxu0 0.0
  %143 = vmatprep.subr.mxu0 0.0
  %144 = vmatpush1.msra.mxu0 0.0
  %145 = vmatprep.subr.mxu0 0.0
  %146 = vmatpush1.msra.mxu0 0.0
  %147 = vmatprep.subr.mxu0 0.0
  %148 = vmatpush1.msra.mxu0 0.0
  %149 = vmatprep.subr.mxu0 0.0
  %150 = vmatpush1.msra.mxu0 0.0
  %151 = vmatprep.subr.mxu0 0.0
  %152 = vmatpush1.msra.mxu0 0.0
  %153 = vmatprep.subr.mxu0 0.0
  %154 = vmatpush1.msra.mxu0 0.0
  %155 = vmatprep.subr.mxu0 0.0
  %156 = vmatpush1.msra.mxu0 0.0
  %157 = vmatprep.subr.mxu0 0.0
  %158 = vmatpush1.msra.mxu0 0.0
  %159 = vmatprep.subr.mxu0 0.0
  %160 = vmatpush1.msra.mxu0 0.0
  %161 = vmatprep.subr.mxu0 0.0
  %162 = vmatpush1.msra.mxu0 0.0
  %163 = vmatprep.subr.mxu0 0.0
  %164 = vmatpush1.msra.mxu0 0.0
  %165 = vmatprep.subr.mxu0 0.0
  %166 = vmatpush1.msra.mxu0 0.0
  %167 = vmatprep.subr.mxu0 0.0
  %168 = vmatpush1.msra.mxu0 0.0
  %169 = vmatprep.subr.mxu0 0.0
  %170 = vmatpush1.msra.mxu0 0.0
  %171 = vmatprep.subr.mxu0 0.0
  %172 = vmatpush1.msra.mxu0 0.0
  %173 = vmatprep.subr.mxu0 0.0
  %174 = vmatpush1.msra.mxu0 0.0
  %175 = vmatprep.mubr.f32.mxu0 0.0
  %176 = vmatmul.mubr.f32.gmra.mrb[0].mxu0 %v109
  %v177 = vpop.f32.mrb[0].mxu0
  %v178 = vadd.f32 %v107, %v177
  %v179 = vpop.f32.mrb[0].mxu0
  %180 = vdwg.mxu0
  %v181 = vrot.slane %v178, 4
  %v182 = vmax.f32 %v178, %v181
  %v183 = vrot.slane %v182, 2
  %v184 = vmax.f32 %v182, %v183
  %v185 = vrot.slane %v184, 1
  %v186 = vmax.f32 %v184, %v185
  %v187 = vsub.f32 %v178, %v186
  %v188 = vmul.f32 %v187, 1.442695
  %v189 = vpow.pop %v188
  %v190 = vrot.slane %v189, 4
  %v191 = vadd.f32 %v189, %v190
  %v192 = vrot.slane %v191, 2
  %v193 = vadd.f32 %v191, %v192
  %v194 = vrot.slane %v193, 1
  %v195 = vadd.f32 %v193, %v194
  %v196 = vlog2.pop %v195
  %v197 = vmul.f32 %v196, 0.6931472
  %v198 = vadd.f32 %v186, %v197
  %v199 = vsub.f32 %v178, %v198
  %200 = vst [vmem:[%s3] sm:$0xff] %v199
  // Predicated region
  $region14: #{neural_net_forward.1} parent=0 // pred_check
    _
  $region15: #{neural_net_forward.1} parent=0 // pred_check_branch
    %202 = sbr.rel (0) target = $region17
  $region16: #{neural_net_forward.1} parent=0 // pred_region
    _
  $region17: #{neural_net_forward.1} parent=0 // pred_fallthru
    _
  // Predicated region
  $region18: #{neural_net_forward.1} parent=0 // pred_check
    _
  $region19: #{neural_net_forward.1} parent=0 // pred_check_branch
    %204 = sbr.rel (0) target = $region21
  $region20: #{neural_net_forward.1} parent=0 // pred_region
    _
  $region21: #{neural_net_forward.1} parent=0 // pred_fallthru
    _

</llo_original>
